<compile_context>
chip_gen: v5e
topology: v5e:2x2
jax: 0.10.0
libtpu: 0.0.40
codegen_flags: <defaults>
</compile_context>

<pallas_src>
import jax
import jax.numpy as jnp
from jax import lax
from jax.experimental import pallas as pl
from jax.experimental.pallas import tpu as pltpu


# Conservative "table fits VMEM" threshold: leaves pipeline headroom even on v7x (64 MiB VMEM,
# 32 MiB scoped default).  Larger tables take the HBM row-gather fallback.
_RESIDENT_TABLE_MAX_BYTES = 24 << 20


def resident_table_kernel(ids_ref, p_ref, emb_ref, out_ref):
    # ids_ref : (B*S,) int32 in SMEM (scalar prefetch) -- flattened token ids.
    # p_ref   : (row_tile, D) positional-encoding rows for this flat tile (VMEM).
    # emb_ref : (V, D) embedding table, resident in VMEM (same block every grid step).
    # out_ref : (row_tile, D) output block of the flat (B*S, D) slab.
    row_tile = out_ref.shape[0]
    base = pl.program_id(0) * row_tile

    def gather(i, carry):
        tok = ids_ref[base + i]
        out_ref[pl.ds(i, 1), :] = emb_ref[pl.ds(tok, 1), :].astype(out_ref.dtype)
        return carry

    lax.fori_loop(0, row_tile, gather, 0)

    # One dense, lane-/sublane-full add + store for the whole tile.
    out_ref[...] = out_ref[...] + p_ref[...].astype(out_ref.dtype)


def hbm_gather_kernel(ids_ref, p_ref, emb_hbm, out_ref, gbuf, sems):
    # ids_ref : (B*S,) int32 in SMEM (scalar prefetch).
    # p_ref   : (row_tile, D) positional-encoding rows for this flat tile (VMEM).
    # emb_hbm : (V, D) ref left in HBM (memory_space=pl.ANY); rows gathered manually via DMA.
    # out_ref : (row_tile, D) output block of the flat (B*S, D) slab.
    # gbuf    : (2, row_tile, D) VMEM scratch -- double-buffered gathered embedding rows.
    # sems    : (2,) DMA semaphores, one per buffer slot.
    c = pl.program_id(0)
    s = pl.program_id(1)
    n_s = pl.num_programs(1)
    row_tile = out_ref.shape[0]

    def start_gather(tile, slot):
        base = (c * n_s + tile) * row_tile

        def issue(i, carry):
            tok = ids_ref[base + i]
            pltpu.make_async_copy(emb_hbm.at[tok], gbuf.at[slot, i], sems.at[slot]).start()
            return carry

        lax.fori_loop(0, row_tile, issue, 0)

    slot = s % 2

    # Prime the pipeline at the first tile of this core's range.
    @pl.when(s == 0)
    def _():
        start_gather(0, 0)

    # Prefetch the NEXT tile BEFORE waiting on the current one: keeps two tiles' row-DMAs in
    # flight and moves the SMEM id reads for tile s+1 ahead of the .wait().
    @pl.when(s + 1 < n_s)
    def _():
        start_gather(s + 1, 1 - slot)

    # Aggregate wait: all row copies for this slot signal sems[slot]; one descriptor sized to the
    # whole (row_tile, D) slot waits for their combined byte count at once (no per-row waits, no
    # redundant SMEM id reads).
    pltpu.make_async_copy(gbuf.at[slot], gbuf.at[slot], sems.at[slot]).wait()

    out_ref[...] = gbuf[slot].astype(out_ref.dtype) + p_ref[...].astype(out_ref.dtype)


def _pick_row_tile(batch, seq, cap=512):
    """Largest flat row tile: multiple of 8, divides batch*seq, <= cap, compatible with P tiling."""
    total = batch * seq
    assert seq % 8 == 0 and total % 8 == 0, "seq_len must be a multiple of 8 for this kernel"
    best = 8
    for cand in range(8, min(total, cap) + 1, 8):
        if total % cand == 0 and (seq % cand == 0 or cand % seq == 0):
            best = cand
    return best


def position_embedding(ids, emb_table, P, *, row_tile=None, force_hbm_gather=False):
    """Pallas equivalent of PositionEmbedding.forward: embedding(ids) + P (requires seq == max_len)."""
    B, S = ids.shape
    V, D = emb_table.shape
    assert P.shape == (S, D), "forward() requires seq_len == max_len"

    if row_tile is None:
        row_tile = _pick_row_tile(B, S)
    total = B * S
    assert total % row_tile == 0 and row_tile % 8 == 0, "row_tile must divide B*S and be a multiple of 8"
    assert S % row_tile == 0 or row_tile % S == 0, "row_tile must divide S or be a multiple of S"
    n_tiles = total // row_tile

    # PyTorch promotes embedding(dtype) + f32 P; mirror that instead of truncating to the table dtype.
    out_dtype = jnp.promote_types(emb_table.dtype, P.dtype)

    # Clamp ids so a bad token id cannot issue an out-of-bounds gather / DMA.
    ids_flat = jnp.clip(ids.reshape(-1).astype(jnp.int32), 0, V - 1)

    # Positional-encoding operand + its block index (in units of row_tile) for a flat tile index.
    if row_tile <= S:
        n_p_tiles = S // row_tile
        p_arr = P
        p_block_index = lambda ft: (ft % n_p_tiles, 0)
    else:
        p_arr = jnp.tile(P, (row_tile // S, 1))          # (row_tile, D); stays resident
        p_block_index = lambda ft: (0, 0)

    table_bytes = V * D * emb_table.dtype.itemsize
    block_bytes = row_tile * D * (p_arr.dtype.itemsize + out_dtype.itemsize
                                  + 2 * emb_table.dtype.itemsize)
    # Raise the scoped-VMEM limit so big tiles / the resident table fit (capped for v7x's 64 MiB).
    vmem_limit = int(min(max(table_bytes + 4 * block_bytes + (8 << 20), 32 << 20), 60 << 20))

    use_resident = (not force_hbm_gather) and table_bytes <= _RESIDENT_TABLE_MAX_BYTES

    if use_resident:
        out_flat = pl.pallas_call(
            resident_table_kernel,
            out_shape=jax.ShapeDtypeStruct((total, D), out_dtype),
            grid_spec=pltpu.PrefetchScalarGridSpec(
                num_scalar_prefetch=1,                      # ids_flat -> SMEM
                grid=(n_tiles,),
                in_specs=[
                    pl.BlockSpec((row_tile, D), lambda t, ids: p_block_index(t)),
                    # Same block every step -> whole table DMA'd into VMEM once, stays resident.
                    pl.BlockSpec((V, D), lambda t, ids: (0, 0)),
                ],
                out_specs=pl.BlockSpec((row_tile, D), lambda t, ids: (t, 0)),
            ),
            compiler_params=pltpu.CompilerParams(
                dimension_semantics=("parallel",),          # all tiles independent -> megacore on v7x
                vmem_limit_bytes=vmem_limit),
            cost_estimate=pl.CostEstimate(
                flops=total * D,
                transcendentals=0,
                bytes_accessed=table_bytes + 2 * out_dtype.itemsize * total * D + 4 * total),
        )(ids_flat, p_arr, emb_table)
        return out_flat.reshape(B, S, D)

    # Large-vocab fallback: HBM-resident table, manual double-buffered row gather.
    n_par = 2 if (n_tiles >= 2 and n_tiles % 2 == 0) else 1   # shard across v7x's 2 TensorCores
    tiles_per_par = n_tiles // n_par

    out_flat = pl.pallas_call(
        hbm_gather_kernel,
        out_shape=jax.ShapeDtypeStruct((total, D), out_dtype),
        grid_spec=pltpu.PrefetchScalarGridSpec(
            num_scalar_prefetch=1,                          # ids_flat -> SMEM
            grid=(n_par, tiles_per_par),
            in_specs=[
                pl.BlockSpec((row_tile, D),
                             lambda c, s, ids: p_block_index(c * tiles_per_par + s)),
                pl.BlockSpec(memory_space=pl.ANY),          # table stays in HBM; rows gathered via DMA
            ],
            out_specs=pl.BlockSpec((row_tile, D),
                                   lambda c, s, ids: (c * tiles_per_par + s, 0)),
            scratch_shapes=[
                pltpu.VMEM((2, row_tile, D), emb_table.dtype),   # double-buffered gather target
                pltpu.SemaphoreType.DMA((2,)),                   # one DMA sem per slot
            ],
        ),
        compiler_params=pltpu.CompilerParams(
            dimension_semantics=("parallel", "arbitrary"),
            vmem_limit_bytes=vmem_limit),
        cost_estimate=pl.CostEstimate(
            flops=total * D,
            transcendentals=0,
            bytes_accessed=(emb_table.dtype.itemsize + p_arr.dtype.itemsize
                            + out_dtype.itemsize) * total * D + 4 * total),
    )(ids_flat, p_arr, emb_table)
    return out_flat.reshape(B, S, D)


def make_sinusoid_pe(max_len, num_hiddens):
    # Exact port of PositionEmbedding.getPosition (without the leading unsqueeze).
    pos = jnp.arange(max_len, dtype=jnp.float32).reshape(-1, 1)
    div = jnp.exp(jnp.arange(0, num_hiddens, 2, dtype=jnp.float32)
                  / num_hiddens * -jnp.log(jnp.float32(10000.0)))
    ang = pos * div                                      # (max_len, num_hiddens//2)
    P = jnp.zeros((max_len, num_hiddens), dtype=jnp.float32)
    P = P.at[:, 0::2].set(jnp.sin(ang))
    P = P.at[:, 1::2].set(jnp.cos(ang))
    return P


if __name__ == "__main__":
    # Small but TPU-friendly shapes: lane-dense D (multiple of 128), seq a multiple of 8.
    vocab_size, num_hiddens, max_len, batch = 512, 128, 32, 4

    key = jax.random.PRNGKey(0)
    k_emb, k_ids = jax.random.split(key)

    # nn.Embedding default init: weights ~ N(0, 1)
    emb_table = jax.random.normal(k_emb, (vocab_size, num_hiddens), dtype=jnp.float32)
    ids = jax.random.randint(k_ids, (batch, max_len), 0, vocab_size, dtype=jnp.int32)
    P = make_sinusoid_pe(max_len, num_hiddens)

    # Pure-JAX reference of the PyTorch forward: embedding(X) + P.expand(B, -1, -1)
    ref = emb_table[ids] + P[None, :, :]

    # 1) Resident-table fast path, auto tile (row_tile=128 -> one flat (B*S, D) tile, P tiled resident).
    out = jax.block_until_ready(position_embedding(ids, emb_table, P))
    assert out.shape == (batch, max_len, num_hiddens)
    assert jnp.allclose(out, ref, atol=1e-5, rtol=1e-5)

    # 2) Resident-table path with smaller tiles: exercises the flat grid + wrapping P index map.
    out_tiled = jax.block_until_ready(position_embedding(ids, emb_table, P, row_tile=16))
    assert jnp.allclose(out_tiled, ref, atol=1e-5, rtol=1e-5)

    # 3) HBM row-gather fallback (large-vocab path): exercises the 2-way parallel split, the
    #    prefetch-before-wait double buffer, and the aggregate per-slot wait.
    out_gather = jax.block_until_ready(
        position_embedding(ids, emb_table, P, row_tile=16, force_hbm_gather=True))
    assert jnp.allclose(out_gather, ref, atol=1e-5, rtol=1e-5)

    print("KERNEL_OK")
</pallas_src>

<mosaic_0001>
module attributes {stable_mosaic.version = 11 : i64} {
  func.func @resident_table_kernel(%arg0: i32, %arg1: memref<128xi32, #tpu.memory_space<smem>>, %arg2: memref<128x128xf32, #tpu.memory_space<vmem>>, %arg3: memref<512x128xf32, #tpu.memory_space<vmem>>, %arg4: memref<128x128xf32, #tpu.memory_space<vmem>>) attributes {dimension_semantics = [#tpu.dimension_semantics<parallel>], iteration_bounds = array<i64: 1>, scalar_prefetch = 1 : i64, scratch_operands = 0 : i64, tpu.core_type = #tpu.core_type<tc>, window_params = [{pipeline_mode = #tpu.pipeline_mode<synchronous>, transform_indices = @transform_0, window_bounds = array<i64: 128, 128>}, {pipeline_mode = #tpu.pipeline_mode<synchronous>, transform_indices = @transform_1, window_bounds = array<i64: 512, 128>}, {transform_indices = @transform_2, window_bounds = array<i64: 128, 128>}]} {
    %c128_i32 = arith.constant 128 : i32
    %0 = arith.muli %arg0, %c128_i32 : i32
    %c0_i32 = arith.constant 0 : i32
    %c128_i32_0 = arith.constant 128 : i32
    %1 = arith.addi %c0_i32, %c128_i32_0 : i32
    %c1_i32 = arith.constant 1 : i32
    scf.for %arg5 = %c0_i32 to %1 step %c1_i32  : i32 {
      %6 = arith.addi %0, %arg5 : i32
      %7 = arith.index_cast %6 : i32 to index
      %8 = memref.load %arg1[%7] : memref<128xi32, #tpu.memory_space<smem>>
      %9 = arith.index_cast %8 : i32 to index
      %c0_7 = arith.constant 0 : index
      %10 = vector.load %arg3[%9, %c0_7] : memref<512x128xf32, #tpu.memory_space<vmem>>, vector<1x128xf32>
      %11 = arith.index_cast %arg5 : i32 to index
      %c0_8 = arith.constant 0 : index
      %12 = vector.load %arg4[%11, %c0_8] : memref<128x128xf32, #tpu.memory_space<vmem>>, vector<1x128xf32>
      tpu.vector_store %arg4[%11, %c0_8], %10 {strides = array<i32>} : memref<128x128xf32, #tpu.memory_space<vmem>>, vector<1x128xf32>,
    }
    %c128_i32_1 = arith.constant 128 : i32
    %c0 = arith.constant 0 : index
    %c0_2 = arith.constant 0 : index
    %2 = vector.load %arg4[%c0, %c0_2] : memref<128x128xf32, #tpu.memory_space<vmem>>, vector<128x128xf32>
    %c0_3 = arith.constant 0 : index
    %c0_4 = arith.constant 0 : index
    %3 = vector.load %arg2[%c0_3, %c0_4] : memref<128x128xf32, #tpu.memory_space<vmem>>, vector<128x128xf32>
    %4 = arith.addf %2, %3 : vector<128x128xf32>
    %c0_5 = arith.constant 0 : index
    %c0_6 = arith.constant 0 : index
    %5 = vector.load %arg4[%c0_5, %c0_6] : memref<128x128xf32, #tpu.memory_space<vmem>>, vector<128x128xf32>
    tpu.vector_store %arg4[%c0_5, %c0_6], %4 {strides = array<i32>} : memref<128x128xf32, #tpu.memory_space<vmem>>, vector<128x128xf32>,
    return
  }
  func.func @transform_0(%arg0: i32, %arg1: memref<128xi32, #tpu.memory_space<smem>>) -> (i32, i32) {
    %c0_i32 = arith.constant 0 : i32
    %c0_i32_0 = arith.constant 0 : i32
    %c0_i32_1 = arith.constant 0 : i32
    return %c0_i32, %c0_i32_0 : i32, i32
  }
  func.func @transform_1(%arg0: i32, %arg1: memref<128xi32, #tpu.memory_space<smem>>) -> (i32, i32) {
    %c0_i32 = arith.constant 0 : i32
    %c0_i32_0 = arith.constant 0 : i32
    %c0_i32_1 = arith.constant 0 : i32
    return %c0_i32, %c0_i32_0 : i32, i32
  }
  func.func @transform_2(%arg0: i32, %arg1: memref<128xi32, #tpu.memory_space<smem>>) -> (i32, i32) {
    %c0_i32 = arith.constant 0 : i32
    %c0_i32_0 = arith.constant 0 : i32
    return %arg0, %c0_i32 : i32, i32
  }
}

</mosaic_0001>

<llo_original>
// kernel: tpu_custom_call.1
$region0: #{tpu_custom_call.1}
  #allocation0 [shape = 'u32[]', space=smem, size = 0x4, offset = 0x4, fixed_abs, tag = 'smem constant byte address 0x4 - core index']
  #allocation1 [shape = 'u32[72,128]{1,0:T(1,128)}', space=vmem, size = 0x9000, scoped, tag = 'internal scratch']
  #allocation2 [shape = 's32[1]{0}', space=sflag, size = 0x4, scoped, tag = 'scoped memory for tpu_custom_call.1']
  #allocation3 [shape = 'u8[512]{0}', space=smem, size = 0x200, scoped, tag = 'prefetched SMEM operand 0']
  %s0 = inlined_call_operand.hbm [shape: s32[128], index: 0, kind: input, shape index: {}]
  %s1 = inlined_call_operand.hbm [shape: f32[128,128], index: 1, kind: input, shape index: {}]
  %s2 = inlined_call_operand.hbm [shape: f32[512,128], index: 2, kind: input, shape index: {}]
  %s3 = inlined_call_operand.hbm [shape: f32[128,128], index: 3, kind: output, shape index: {}]
  %s4 = sld [smem:[#allocation0]]
  $region33: #{tpu_custom_call.1} parent=0
    _
  %s6 = ssub.s32 1, %s4
  %s7 = scalar_select 0, %s6, %s4
  %s9 = sshll.u32 %s0, 4
  %s10 = int_to_ptr.hbm [resolvable:$true] %s9
  %12 = dma.hbm_to_smem %s10, 16, [#allocation3], [#allocation2]
  %14 = dma.done [#allocation2], 16
  %15 = sfence
  $region1: #{tpu_custom_call.1} parent=0
    #allocation4 [shape = 'u8[65536]{0}', space=vmem, size = 0x10000, scoped, tag = 'input window, operand 1, single buffered']
    #allocation5 [shape = 's32[1]{0}', space=sflag, size = 0x4, scoped, tag = 'scoped memory for tpu_custom_call.1']
    #allocation6 [shape = 's32[1]{0}', space=sflag, size = 0x4, scoped, tag = 'scoped memory for tpu_custom_call.1']
    #allocation7 [shape = 'u8[262144]{0}', space=vmem, size = 0x40000, scoped, tag = 'input window, operand 2, single buffered']
    #allocation8 [shape = 's32[1]{0}', space=sflag, size = 0x4, scoped, tag = 'scoped memory for tpu_custom_call.1']
    #allocation9 [shape = 'u8[65536]{0}', space=vmem, size = 0x10000, scoped, tag = 'output window, operand 0, single buffered']
    %16 = vsyncpa [#allocation5], 0
    %17 = vsyncpa [#allocation8], 0
    %18 = vsyncpa [#allocation6], 0
    // Predicated region
    $region2: #{tpu_custom_call.1} parent=1 // pred_check
      _
    $region3: #{tpu_custom_call.1} parent=1 // pred_check_branch
      %20 = sbr.rel (0) target = $region5
    $region4: #{tpu_custom_call.1} parent=1 // pred_region
      %22 = vsyncadd [#allocation5], 0
      %s23 = sshll.u32 %s1, 4
      %s24 = int_to_ptr.hbm [resolvable:$true] %s23
      %s25 = sshll.u32 [#allocation4], 4
      %s26 = int_to_ptr.vmem [resolvable:$true] %s25
      %31 = dma.hbm_to_vmem [thread:$0]  %s24, 2048, %s26, [#allocation5], 128, 128, 8
    $region5: #{tpu_custom_call.1} parent=1 // pred_fallthru
      _
    // Predicated region
    $region6: #{tpu_custom_call.1} parent=1 // pred_check
      _
    $region7: #{tpu_custom_call.1} parent=1 // pred_check_branch
      %33 = sbr.rel (0) target = $region9
    $region8: #{tpu_custom_call.1} parent=1 // pred_region
      %35 = vsyncadd [#allocation8], 0
      %s36 = sshll.u32 %s2, 4
      %s37 = int_to_ptr.hbm [resolvable:$true] %s36
      %s38 = sshll.u32 [#allocation7], 4
      %s39 = int_to_ptr.vmem [resolvable:$true] %s38
      %44 = dma.hbm_to_vmem [thread:$0]  %s37, 8192, %s39, [#allocation8], 128, 128, 8
    $region9: #{tpu_custom_call.1} parent=1 // pred_fallthru
      _
    // Predicated region
    $region10: #{tpu_custom_call.1} parent=1 // pred_check
      _
    $region11: #{tpu_custom_call.1} parent=1 // pred_check_branch
      %46 = sbr.rel (0) target = $region13
    $region12: #{tpu_custom_call.1} parent=1 // pred_region
      %48 = dma.done [#allocation5], 2048
    $region13: #{tpu_custom_call.1} parent=1 // pred_fallthru
      _
    // Predicated region
    $region14: #{tpu_custom_call.1} parent=1 // pred_check
      _
    $region15: #{tpu_custom_call.1} parent=1 // pred_check_branch
      %50 = sbr.rel (0) target = $region17
    $region16: #{tpu_custom_call.1} parent=1 // pred_region
      %52 = dma.done [#allocation8], 8192
    $region17: #{tpu_custom_call.1} parent=1 // pred_fallthru
      _
    %s53 = smul.u32 0, 128
    loop: start=0, step=1, limit=128
    $region18: #{tpu_custom_call.1} parent=1 // loop_pre_header
      _
    $region19: #{tpu_custom_call.1} parent=1 // loop_header
      %s55 = sphi 0, %s59
      %p56 = scmp.ge.s32.totalorder %s55, 128
    $region20: #{tpu_custom_call.1} parent=1 // loop_header_branch
      %58 = sbr.rel (%p56) target = $region24
    $region21: #{tpu_custom_call.1} parent=1 // loop_body
      %s60 = sadd.s32 %s53, %s55
      %s61 = sld [smem:[#allocation3 + %s60]]
      %s62 = scalar_lea.vmem [#allocation7], %s61
      %v63 = vld [vmem:[%s62] sm:$0x1]
      %s64 = scalar_lea.vmem [#allocation9], %s55
      %65 = vst [vmem:[%s64] sm:$0x1] %v63
    $region22: #{tpu_custom_call.1} parent=1 // loop_footer
      %s59 = sadd.s32 1, %s55
    $region23: #{tpu_custom_call.1} parent=1 // loop_footer_branch
      %54 = sbr.rel target = $region19
    $region24: #{tpu_custom_call.1} parent=1 // loop_exit
      _
    %v66 = vld [vmem:[#allocation9] sm:$0xff]
    %v67 = vld [vmem:[#allocation9 + $0x8] sm:$0xff]
    %v68 = vld [vmem:[#allocation9 + $0x10] sm:$0xff]
    %v69 = vld [vmem:[#allocation9 + $0x18] sm:$0xff]
    %v70 = vld [vmem:[#allocation9 + $0x20] sm:$0xff]
    %v71 = vld [vmem:[#allocation9 + $0x28] sm:$0xff]
    %v72 = vld [vmem:[#allocation9 + $0x30] sm:$0xff]
    %v73 = vld [vmem:[#allocation9 + $0x38] sm:$0xff]
    %v74 = vld [vmem:[#allocation9 + $0x40] sm:$0xff]
    %v75 = vld [vmem:[#allocation9 + $0x48] sm:$0xff]
    %v76 = vld [vmem:[#allocation9 + $0x50] sm:$0xff]
    %v77 = vld [vmem:[#allocation9 + $0x58] sm:$0xff]
    %v78 = vld [vmem:[#allocation9 + $0x60] sm:$0xff]
    %v79 = vld [vmem:[#allocation9 + $0x68] sm:$0xff]
    %v80 = vld [vmem:[#allocation9 + $0x70] sm:$0xff]
    %v81 = vld [vmem:[#allocation9 + $0x78] sm:$0xff]
    %v82 = vld [vmem:[#allocation4] sm:$0xff]
    %v83 = vld [vmem:[#allocation4 + $0x8] sm:$0xff]
    %v84 = vld [vmem:[#allocation4 + $0x10] sm:$0xff]
    %v85 = vld [vmem:[#allocation4 + $0x18] sm:$0xff]
    %v86 = vld [vmem:[#allocation4 + $0x20] sm:$0xff]
    %v87 = vld [vmem:[#allocation4 + $0x28] sm:$0xff]
    %v88 = vld [vmem:[#allocation4 + $0x30] sm:$0xff]
    %v89 = vld [vmem:[#allocation4 + $0x38] sm:$0xff]
    %v90 = vld [vmem:[#allocation4 + $0x40] sm:$0xff]
    %v91 = vld [vmem:[#allocation4 + $0x48] sm:$0xff]
    %v92 = vld [vmem:[#allocation4 + $0x50] sm:$0xff]
    %v93 = vld [vmem:[#allocation4 + $0x58] sm:$0xff]
    %v94 = vld [vmem:[#allocation4 + $0x60] sm:$0xff]
    %v95 = vld [vmem:[#allocation4 + $0x68] sm:$0xff]
    %v96 = vld [vmem:[#allocation4 + $0x70] sm:$0xff]
    %v97 = vld [vmem:[#allocation4 + $0x78] sm:$0xff]
    %v98 = vadd.f32 %v66, %v82
    %v99 = vadd.f32 %v67, %v83
    %v100 = vadd.f32 %v68, %v84
    %v101 = vadd.f32 %v69, %v85
    %v102 = vadd.f32 %v70, %v86
    %v103 = vadd.f32 %v71, %v87
    %v104 = vadd.f32 %v72, %v88
    %v105 = vadd.f32 %v73, %v89
    %v106 = vadd.f32 %v74, %v90
    %v107 = vadd.f32 %v75, %v91
    %v108 = vadd.f32 %v76, %v92
    %v109 = vadd.f32 %v77, %v93
    %v110 = vadd.f32 %v78, %v94
    %v111 = vadd.f32 %v79, %v95
    %v112 = vadd.f32 %v80, %v96
    %v113 = vadd.f32 %v81, %v97
    %114 = vst [vmem:[#allocation9] sm:$0xff] %v98
    %115 = vst [vmem:[#allocation9 + $0x8] sm:$0xff] %v99
    %116 = vst [vmem:[#allocation9 + $0x10] sm:$0xff] %v100
    %117 = vst [vmem:[#allocation9 + $0x18] sm:$0xff] %v101
    %118 = vst [vmem:[#allocation9 + $0x20] sm:$0xff] %v102
    %119 = vst [vmem:[#allocation9 + $0x28] sm:$0xff] %v103
    %120 = vst [vmem:[#allocation9 + $0x30] sm:$0xff] %v104
    %121 = vst [vmem:[#allocation9 + $0x38] sm:$0xff] %v105
    %122 = vst [vmem:[#allocation9 + $0x40] sm:$0xff] %v106
    %123 = vst [vmem:[#allocation9 + $0x48] sm:$0xff] %v107
    %124 = vst [vmem:[#allocation9 + $0x50] sm:$0xff] %v108
    %125 = vst [vmem:[#allocation9 + $0x58] sm:$0xff] %v109
    %126 = vst [vmem:[#allocation9 + $0x60] sm:$0xff] %v110
    %127 = vst [vmem:[#allocation9 + $0x68] sm:$0xff] %v111
    %128 = vst [vmem:[#allocation9 + $0x70] sm:$0xff] %v112
    %129 = vst [vmem:[#allocation9 + $0x78] sm:$0xff] %v113
    // Predicated region
    $region25: #{tpu_custom_call.1} parent=1 // pred_check
      _
    $region26: #{tpu_custom_call.1} parent=1 // pred_check_branch
      %131 = sbr.rel (0) target = $region28
    $region27: #{tpu_custom_call.1} parent=1 // pred_region
      %133 = vsyncadd [#allocation6], 0
      %s134 = sshll.u32 [#allocation9], 4
      %s135 = int_to_ptr.vmem [resolvable:$true] %s134
      %s136 = sshll.u32 %s3, 4
      %s137 = int_to_ptr.hbm [resolvable:$true] %s136
      %142 = dma.vmem_to_hbm [thread:$0]  %s135, 2048, %s137, [#allocation6], 128, 128, 8
    $region28: #{tpu_custom_call.1} parent=1 // pred_fallthru
      _
    // Predicated region
    $region29: #{tpu_custom_call.1} parent=1 // pred_check
      _
    $region30: #{tpu_custom_call.1} parent=1 // pred_check_branch
      %144 = sbr.rel (0) target = $region32
    $region31: #{tpu_custom_call.1} parent=1 // pred_region
      %146 = dma.done [#allocation6], 2048
    $region32: #{tpu_custom_call.1} parent=1 // pred_fallthru
      _
    %147 = vsyncpa [#allocation5], 1
    %148 = vsyncpa [#allocation8], 1
    %149 = vsyncpa [#allocation6], 1

</llo_original>
